<compile_context>
chip_gen: v5e
topology: v5e:2x2
jax: 0.10.0
libtpu: 0.0.40
codegen_flags: <defaults>
</compile_context>

<pallas_src>
import functools
from typing import Any, Mapping, Sequence

import jax
import jax.numpy as jnp
from jax import lax
from jax.experimental import pallas as pl
from jax.experimental.pallas import tpu as pltpu

_LANE = 128      # feature dims padded to a multiple of the lane width
_SUBLANE = 16    # sample tiles padded to a multiple of this (covers f32 and bf16 packing)
_EPS = 1e-30     # guards zero-variance spaces (denominator == 0 -> result 0, not NaN)


# ----------------------------------------------------------------------------- helpers


def _round_up(x: int, m: int) -> int:
    return ((x + m - 1) // m) * m


def _pad2d(a: jax.Array, rows: int, cols: int) -> jax.Array:
    r, c = a.shape
    if r == rows and c == cols:
        return a
    # Zero padding is exact: zero rows/columns contribute nothing to the uncentered sums,
    # and the finalize step divides by the *true* sample count.
    return jnp.pad(a, ((0, rows - r), (0, cols - c)))


def _vmem_capacity_bytes() -> int:
    try:
        return int(pltpu.get_tpu_info().vmem_capacity_bytes)
    except Exception:  # conservative fallback = v7x floor
        return 64 * 1024 * 1024


def _vmem_limit(required_bytes: int) -> int:
    cap = _vmem_capacity_bytes()
    want = max(32 * 1024 * 1024, int(required_bytes * 1.4) + (4 << 20))
    return int(min(want, (cap * 9) // 10))


def _contract_samples(a, b):
    """(T, Da) x (T, Db) -> (Da, Db) = a^T b, contracting the sample axis of both operands
    directly (no materialized transpose), accumulating in f32 on the MXU."""
    return lax.dot_general(
        a, b, (((0,), (0,)), ((), ())), preferred_element_type=jnp.float32
    )


# ----------------------------------------------------------------------------- kernels


def _x_stats_kernel(x_ref, mx_ref, hxx_ref, sxx_acc, sx_acc, *,
                    num_samples, blk, nblk, op_dtype):
    """grid = (d1 blocks [parallel], N tiles [arbitrary]).  Streams space1; emits
    per-block column means and per-block partial ||Xc^T Xc||_F^2 (scaled by 1/N^2)."""
    ji = pl.program_id(0)
    ni = pl.program_id(1)

    @pl.when(ni == 0)
    def _init():
        sxx_acc[...] = jnp.zeros_like(sxx_acc)
        sx_acc[...] = jnp.zeros_like(sx_acc)

    col0 = pl.multiple_of(ji * blk, blk)
    x = x_ref[...]                                          # (tn, d1p), native dtype
    x_blk = x if nblk == 1 else x_ref[:, pl.ds(col0, blk)]  # (tn, blk) aligned slice
    xo = x if x.dtype == op_dtype else x.astype(op_dtype)
    xbo = x_blk if x_blk.dtype == op_dtype else x_blk.astype(op_dtype)

    sxx_acc[...] += _contract_samples(xo, xbo)              # uncentered X^T X[:, block]
    sx_acc[...] += jnp.sum(x, axis=0, dtype=jnp.float32, keepdims=True)

    @pl.when(ni == pl.num_programs(1) - 1)
    def _finalize():
        inv_n = jnp.float32(1.0 / num_samples)
        mx_full = sx_acc[...] * inv_n                       # (1, d1p)
        mx_blk = sx_acc[:, pl.ds(col0, blk)] * inv_n        # (1, blk)
        # Centered Gram scaled by 1/N (scaling cancels in the CKA ratio, keeps f32 bounded).
        gxx = sxx_acc[...] * inv_n - _contract_samples(mx_full, mx_blk)
        mx_ref[...] = mx_blk                                # each block writes its own slab
        hxx_ref[...] = jnp.sum(gxx * gxx, keepdims=True)    # (1, 1) partial


def _pair_kernel(x_ref, y_ref, mx_ref, oxy_ref, oyy_ref,
                 sxy_acc, syy_acc, sy_acc, *,
                 num_samples, tn, blk, nblk, op_dtype, x_resident):
    """grid = (K pairs [parallel], d2 blocks [parallel], N tiles [arbitrary]); resident
    (d1p, blk) / (d2p, blk) f32 Gram accumulators, reset at ni==0 of every (k, block)."""
    ji = pl.program_id(1)
    ni = pl.program_id(2)

    @pl.when(ni == 0)
    def _init():
        sxy_acc[...] = jnp.zeros_like(sxy_acc)
        syy_acc[...] = jnp.zeros_like(syy_acc)
        sy_acc[...] = jnp.zeros_like(sy_acc)

    if x_resident:
        # X lives in VMEM for the whole grid (constant-index full-array block); slice tiles.
        row0 = pl.multiple_of(ni * tn, tn)
        x = x_ref[pl.ds(row0, tn), :]                       # (tn, d1p)
    else:
        x = x_ref[...]                                      # streamed (tn, d1p) tile
    y = y_ref[...]                                          # (tn, d2p) (leading pair dim squeezed)
    col0 = pl.multiple_of(ji * blk, blk)
    y_blk = y if nblk == 1 else y_ref[:, pl.ds(col0, blk)]  # (tn, blk) aligned slice

    xo = x if x.dtype == op_dtype else x.astype(op_dtype)
    yo = y if y.dtype == op_dtype else y.astype(op_dtype)
    ybo = y_blk if y_blk.dtype == op_dtype else y_blk.astype(op_dtype)

    sxy_acc[...] += _contract_samples(xo, ybo)              # (d1p, blk)
    syy_acc[...] += _contract_samples(yo, ybo)              # (d2p, blk)
    sy_acc[...] += jnp.sum(y, axis=0, dtype=jnp.float32, keepdims=True)

    @pl.when(ni == pl.num_programs(2) - 1)
    def _finalize():
        inv_n = jnp.float32(1.0 / num_samples)
        mx = mx_ref[...]                                    # (1, d1p) cached space1 means
        my = sy_acc[...] * inv_n                            # (1, d2p)
        my_blk = sy_acc[:, pl.ds(col0, blk)] * inv_n        # (1, blk)
        gxy = sxy_acc[...] * inv_n - _contract_samples(mx, my_blk)
        gyy = syy_acc[...] * inv_n - _contract_samples(my, my_blk)
        oxy_ref[...] = jnp.sum(gxy * gxy, keepdims=True)    # (1, 1) partial hsic_xy
        oyy_ref[...] = jnp.sum(gyy * gyy, keepdims=True)    # (1, 1) partial hsic_yy


# ----------------------------------------------------------------------------- wrappers


def _x_stats_call(x_padded, *, tn, grid_n, blk, num_samples, op_dtype):
    n_pad, d1p = x_padded.shape
    nblk = d1p // blk
    x_item = jnp.dtype(x_padded.dtype).itemsize
    required = (2 * tn * d1p * x_item                        # double-buffered input
                + 4 * (d1p * blk + d1p)                      # f32 accumulators
                + 2 * 4 * (blk + 1))                         # output buffers
    kernel = functools.partial(_x_stats_kernel, num_samples=num_samples,
                               blk=blk, nblk=nblk, op_dtype=op_dtype)
    mx, hxx = pl.pallas_call(
        kernel,
        out_shape=(jax.ShapeDtypeStruct((1, d1p), jnp.float32),
                   jax.ShapeDtypeStruct((nblk, 1, 1), jnp.float32)),
        grid_spec=pltpu.PrefetchScalarGridSpec(
            num_scalar_prefetch=0,
            grid=(nblk, grid_n),
            in_specs=[pl.BlockSpec((tn, d1p), lambda ji, ni: (ni, 0))],
            out_specs=(pl.BlockSpec((1, blk), lambda ji, ni: (0, ji)),
                       pl.BlockSpec((None, 1, 1), lambda ji, ni: (ji, 0, 0))),
            scratch_shapes=[pltpu.VMEM((d1p, blk), jnp.float32),
                            pltpu.VMEM((1, d1p), jnp.float32)]),
        compiler_params=pltpu.CompilerParams(
            dimension_semantics=("parallel", "arbitrary"),
            vmem_limit_bytes=_vmem_limit(required)),
    )(x_padded)
    return mx, jnp.sum(hxx)


def _pair_call(x_padded, y_stack, mx, *, tn, grid_n, blk, num_samples,
               op_dtype, x_resident):
    n_pad, d1p = x_padded.shape
    k, _, d2p = y_stack.shape
    nblk = d2p // blk
    x_item = jnp.dtype(x_padded.dtype).itemsize
    y_item = jnp.dtype(y_stack.dtype).itemsize
    x_buf = (2 * n_pad * d1p * x_item) if x_resident else (2 * tn * d1p * x_item)
    required = (x_buf
                + 2 * tn * d2p * y_item                      # double-buffered Y tiles
                + 2 * d1p * 4                                # mx input
                + 4 * ((d1p + d2p) * blk + d2p)              # f32 accumulators
                + 4 * 4)                                     # tiny outputs
    kernel = functools.partial(_pair_kernel, num_samples=num_samples, tn=tn,
                               blk=blk, nblk=nblk, op_dtype=op_dtype,
                               x_resident=x_resident)
    if x_resident:
        x_spec = pl.BlockSpec((n_pad, d1p), lambda ki, ji, ni: (0, 0))   # stays in VMEM
    else:
        x_spec = pl.BlockSpec((tn, d1p), lambda ki, ji, ni: (ni, 0))     # streamed tiles
    oxy, oyy = pl.pallas_call(
        kernel,
        out_shape=(jax.ShapeDtypeStruct((k, nblk, 1, 1), jnp.float32),
                   jax.ShapeDtypeStruct((k, nblk, 1, 1), jnp.float32)),
        grid_spec=pltpu.PrefetchScalarGridSpec(
            num_scalar_prefetch=0,
            grid=(k, nblk, grid_n),
            in_specs=[
                x_spec,
                pl.BlockSpec((None, tn, d2p), lambda ki, ji, ni: (ki, ni, 0)),
                pl.BlockSpec((1, d1p), lambda ki, ji, ni: (0, 0)),
            ],
            out_specs=(pl.BlockSpec((None, None, 1, 1), lambda ki, ji, ni: (ki, ji, 0, 0)),
                       pl.BlockSpec((None, None, 1, 1), lambda ki, ji, ni: (ki, ji, 0, 0))),
            scratch_shapes=[pltpu.VMEM((d1p, blk), jnp.float32),
                            pltpu.VMEM((d2p, blk), jnp.float32),
                            pltpu.VMEM((1, d2p), jnp.float32)]),
        compiler_params=pltpu.CompilerParams(
            dimension_semantics=("parallel", "parallel", "arbitrary"),
            vmem_limit_bytes=_vmem_limit(required)),
    )(x_padded, y_stack, mx)
    hsic_xy = jnp.sum(oxy, axis=(1, 2, 3))     # (K,) reduce over d2 blocks
    hsic_yy = jnp.sum(oyy, axis=(1, 2, 3))
    return hsic_xy, hsic_yy


def linear_cka_many(space1, others, *, compute_dtype=None, tile_rows=None,
                    max_feature_block=None, x_resident=None):
    """Linear CKA of space1 against each space in `others`.  space1-side stats are computed
    once; same-shaped others are batched; feature dims are block-tiled to fit VMEM."""
    assert space1.ndim == 2
    if not others:
        return []
    n, d1 = space1.shape
    for o in others:
        assert o.ndim == 2 and o.shape[0] == n, "spaces must share the sample axis"

    budget = int(_vmem_capacity_bytes() * 0.7)
    acc_budget = budget // 3
    x_item = jnp.dtype(space1.dtype).itemsize

    def _pick_blk(per_col_bytes, dp):
        blk = (acc_budget // max(per_col_bytes, 1)) // _LANE * _LANE
        blk = max(_LANE, min(blk, dp))
        if max_feature_block is not None:
            blk = max(_LANE, min(blk, _round_up(max_feature_block, _LANE)))
        return blk

    # space1 geometry, shared by x_stats and every pair call.
    d1p = _round_up(d1, _LANE)
    blk1 = _pick_blk(4 * d1p, d1p)
    d1p = _round_up(d1p, blk1)

    # Group comparison spaces by (feature dim, dtype) so each group is one batched call.
    groups: dict = {}
    for idx, o in enumerate(others):
        groups.setdefault((o.shape[1], jnp.dtype(o.dtype)), []).append(idx)

    geo = {}
    worst_row_bytes = d1p * x_item
    worst_acc = 4 * (d1p * blk1 + d1p)
    for (d2, ydt), _idxs in groups.items():
        d2p = _round_up(d2, _LANE)
        blk2 = _pick_blk(4 * (d1p + d2p), d2p)
        d2p = _round_up(d2p, blk2)
        geo[(d2, ydt)] = (d2p, blk2)
        worst_row_bytes = max(worst_row_bytes, d1p * x_item + d2p * ydt.itemsize)
        worst_acc = max(worst_acc, 4 * ((d1p + d2p) * blk2 + d2p))

    # Adaptive sample tile: >= ~2 MiB streamed per step and >= 512 rows, capped by VMEM.
    n16 = _round_up(n, _SUBLANE)
    if tile_rows is not None:
        tn = max(_SUBLANE, _round_up(min(int(tile_rows), n16), _SUBLANE))
    else:
        input_budget = max(budget - worst_acc, budget // 4)
        tn_target = max(512, (2 * 1024 * 1024 + worst_row_bytes - 1) // worst_row_bytes)
        tn_cap = max(_SUBLANE, input_budget // (2 * worst_row_bytes))
        tn = min(tn_target, tn_cap, n16)
        tn = max(_SUBLANE, (tn // _SUBLANE) * _SUBLANE)
    n_pad = _round_up(n, tn)
    grid_n = n_pad // tn

    x_padded = _pad2d(space1, n_pad, d1p)
    op_dtype_x = jnp.dtype(compute_dtype) if compute_dtype is not None else jnp.dtype(space1.dtype)
    mx, hsic_xx = _x_stats_call(x_padded, tn=tn, grid_n=grid_n, blk=blk1,
                                num_samples=n, op_dtype=op_dtype_x)

    results = [None] * len(others)
    for (d2, ydt), idxs in groups.items():
        d2p, blk2 = geo[(d2, ydt)]
        if compute_dtype is not None:
            op_dtype = jnp.dtype(compute_dtype)
        else:
            op_dtype = jnp.promote_types(space1.dtype, ydt)
        if len(idxs) == 1:   # no host-side stack copy for the common single-pair case
            y_stack = _pad2d(others[idxs[0]], n_pad, d2p)[None]
        else:
            y_stack = jnp.stack([_pad2d(others[i], n_pad, d2p) for i in idxs])
        acc_bytes = 4 * ((d1p + d2p) * blk2 + d2p)
        fits = (2 * n_pad * d1p * x_item + 2 * tn * d2p * ydt.itemsize
                + acc_bytes + d1p * 8) <= budget
        resident = fits if x_resident is None else bool(x_resident) and fits
        hsic_xy, hsic_yy = _pair_call(x_padded, y_stack, mx,
                                      tn=tn, grid_n=grid_n, blk=blk2,
                                      num_samples=n, op_dtype=op_dtype,
                                      x_resident=resident)
        scores = hsic_xy * lax.rsqrt(hsic_xx * hsic_yy + _EPS)     # (K,)
        for j, i in enumerate(idxs):
            results[i] = scores[j]
    return results


# ----------------------------------------------------------------------------- module port


class Metric:
    """JAX/Pallas port of latentis.measure._metrics.Metric (abstract base)."""

    def __init__(self, name: str) -> None:
        self._name: str = name

    def __repr__(self) -> str:  # noqa: D105
        return f"{self.__class__.__name__}(name={self.name})"

    @property
    def name(self) -> str:
        return self._name

    def _forward(self, space1: jax.Array, space2: jax.Array) -> Mapping[str, Any]:
        raise NotImplementedError

    def forward(self, space1: jax.Array, *others: jax.Array) -> Sequence[Mapping[str, Any]]:
        result = [self._forward(space1, other) for other in others]
        return result[0] if len(result) == 1 else result

    __call__ = forward


class LinearCKA(Metric):
    """Concrete Pallas-backed metric (linear CKA).  Overrides `forward` so space1-side work
    is hoisted out of the per-pair loop and same-shaped others are batched."""

    def __init__(self, name: str = "linear_cka", *, compute_dtype=None, tile_rows=None,
                 max_feature_block=None, x_resident=None) -> None:
        super().__init__(name)
        self._kw = dict(compute_dtype=compute_dtype, tile_rows=tile_rows,
                        max_feature_block=max_feature_block, x_resident=x_resident)

    def _forward(self, space1: jax.Array, space2: jax.Array) -> Mapping[str, Any]:
        (score,) = linear_cka_many(space1, [space2], **self._kw)
        return {self.name: score}

    def forward(self, space1: jax.Array, *others: jax.Array) -> Sequence[Mapping[str, Any]]:
        scores = linear_cka_many(space1, list(others), **self._kw)
        result = [{self.name: s} for s in scores]
        return result[0] if len(result) == 1 else result

    __call__ = forward


# ----------------------------------------------------------------------------- demo / check


if __name__ == "__main__":
    key = jax.random.PRNGKey(0)
    k1, k2, k3, k4 = jax.random.split(key, 4)

    # Ragged N, one D not a multiple of 128, one D spanning multiple feature blocks.
    N, D1, D2a, D2b = 500, 192, 96, 256
    space1 = jax.random.normal(k1, (N, D1), dtype=jnp.float32)
    space2 = jax.random.normal(k2, (N, D2a), dtype=jnp.float32)
    # Noisy linear map of space1 (should score high CKA).
    space3 = (space1 @ jax.random.normal(k3, (D1, D2b), dtype=jnp.float32)) * 0.5 \
             + 0.1 * jax.random.normal(k4, (N, D2b), dtype=jnp.float32)

    def _ref_cka(x, y):
        xc = x - x.mean(0, keepdims=True)
        yc = y - y.mean(0, keepdims=True)
        xy = jnp.sum((xc.T @ yc) ** 2)
        xx = jnp.sum((xc.T @ xc) ** 2)
        yy = jnp.sum((yc.T @ yc) ** 2)
        return xy / (jnp.sqrt(xx) * jnp.sqrt(yy))

    ref12 = _ref_cka(space1, space2)
    ref13 = _ref_cka(space1, space3)

    # Small tiles so the demo exercises the N-reduction grid and the feature-block tiling.
    metric = LinearCKA(tile_rows=128, max_feature_block=128)

    single = metric(space1, space2)           # single "other" -> single mapping
    jax.block_until_ready(single["linear_cka"])
    multi = metric(space1, space2, space3)    # two groups (different feature dims)
    for res in multi:
        jax.block_until_ready(res["linear_cka"])

    assert jnp.allclose(single["linear_cka"], ref12, rtol=1e-3, atol=1e-5)
    assert jnp.allclose(multi[0]["linear_cka"], ref12, rtol=1e-3, atol=1e-5)
    assert jnp.allclose(multi[1]["linear_cka"], ref13, rtol=1e-3, atol=1e-5)

    # Streamed-X fallback path (no VMEM-resident space1).
    metric_stream = LinearCKA(tile_rows=128, max_feature_block=128, x_resident=False)
    stream = metric_stream(space1, space3)
    assert jnp.allclose(stream["linear_cka"], ref13, rtol=1e-3, atol=1e-5)

    # Opt-in bf16 Gram path (f32 accumulation) — looser tolerance.
    metric_bf16 = LinearCKA(compute_dtype=jnp.bfloat16, tile_rows=128, max_feature_block=128)
    approx = metric_bf16(space1, space3)
    jax.block_until_ready(approx["linear_cka"])
    assert jnp.isfinite(approx["linear_cka"])
    assert abs(float(approx["linear_cka"]) - float(ref13)) < 5e-2

    # Default adaptive tiling path (single tile / single block at these sizes).
    metric_auto = LinearCKA()
    auto = metric_auto(space1, space2)
    assert jnp.allclose(auto["linear_cka"], ref12, rtol=1e-3, atol=1e-5)

    print("KERNEL_OK")
</pallas_src>

<mosaic_0001>
module attributes {stable_mosaic.version = 11 : i64} {
  func.func @_x_stats_kernel(%arg0: i32, %arg1: i32, %arg2: memref<128x256xf32, #tpu.memory_space<vmem>>, %arg3: memref<1x128xf32, #tpu.memory_space<vmem>>, %arg4: memref<1x1x1xf32, #tpu.memory_space<vmem>>, %arg5: memref<256x128xf32, #tpu.memory_space<vmem>>, %arg6: memref<1x256xf32, #tpu.memory_space<vmem>>) attributes {dimension_semantics = [#tpu.dimension_semantics<parallel>, #tpu.dimension_semantics<arbitrary>], iteration_bounds = array<i64: 2, 4>, scalar_prefetch = 0 : i64, scratch_operands = 2 : i64, tpu.core_type = #tpu.core_type<tc>, window_params = [{transform_indices = @transform_0, window_bounds = array<i64: 128, 256>}, {transform_indices = @transform_1, window_bounds = array<i64: 1, 128>}, {transform_indices = @transform_2, window_bounds = array<i64: 1, 1, 1>}]} {
    %c0_i32 = arith.constant 0 : i32
    %0 = arith.cmpi eq, %arg1, %c0_i32 : i32
    %1 = arith.extui %0 : i1 to i32
    %c0_i32_0 = arith.constant 0 : i32
    %2 = arith.cmpi ne, %1, %c0_i32_0 : i32
    scf.if %2 {
      %cst_13 = arith.constant 0.000000e+00 : f32
      %20 = vector.broadcast %cst_13 : f32 to vector<256x128xf32>
      %c0_14 = arith.constant 0 : index
      %c0_15 = arith.constant 0 : index
      %21 = vector.load %arg5[%c0_14, %c0_15] : memref<256x128xf32, #tpu.memory_space<vmem>>, vector<256x128xf32>
      tpu.vector_store %arg5[%c0_14, %c0_15], %20 {strides = array<i32>} : memref<256x128xf32, #tpu.memory_space<vmem>>, vector<256x128xf32>,
      %cst_16 = arith.constant 0.000000e+00 : f32
      %22 = vector.broadcast %cst_16 : f32 to vector<1x256xf32>
      %c0_17 = arith.constant 0 : index
      %c0_18 = arith.constant 0 : index
      %23 = vector.load %arg6[%c0_17, %c0_18] : memref<1x256xf32, #tpu.memory_space<vmem>>, vector<1x256xf32>
      tpu.vector_store %arg6[%c0_17, %c0_18], %22 {strides = array<i32>} : memref<1x256xf32, #tpu.memory_space<vmem>>, vector<1x256xf32>,
    } else {
    }
    %c128_i32 = arith.constant 128 : i32
    %3 = arith.muli %arg0, %c128_i32 : i32
    %4 = tpu.assume_multiple %3, 128 : i32
    %c0 = arith.constant 0 : index
    %c0_1 = arith.constant 0 : index
    %5 = vector.load %arg2[%c0, %c0_1] : memref<128x256xf32, #tpu.memory_space<vmem>>, vector<128x256xf32>
    %c0_2 = arith.constant 0 : index
    %6 = arith.index_cast %4 : i32 to index
    %7 = vector.load %arg2[%c0_2, %6] : memref<128x256xf32, #tpu.memory_space<vmem>>, vector<128x128xf32>
    %c0_3 = arith.constant 0 : index
    %c0_4 = arith.constant 0 : index
    %8 = vector.load %arg5[%c0_3, %c0_4] : memref<256x128xf32, #tpu.memory_space<vmem>>, vector<256x128xf32>
    %cst = arith.constant dense<0.000000e+00> : vector<256x128xf32>
    %9 = tpu.matmul %5, %7, %cst {dimension_numbers = #tpu.dot_dimension_numbers<[0], [0], [1], [1], [0, 1, 1, 1], [], []>} : vector<128x256xf32>, vector<128x128xf32>, vector<256x128xf32> -> vector<256x128xf32>
    %10 = arith.addf %8, %9 : vector<256x128xf32>
    %c0_5 = arith.constant 0 : index
    %c0_6 = arith.constant 0 : index
    %11 = vector.load %arg5[%c0_5, %c0_6] : memref<256x128xf32, #tpu.memory_space<vmem>>, vector<256x128xf32>
    tpu.vector_store %arg5[%c0_5, %c0_6], %10 {strides = array<i32>} : memref<256x128xf32, #tpu.memory_space<vmem>>, vector<256x128xf32>,
    %c0_7 = arith.constant 0 : index
    %c0_8 = arith.constant 0 : index
    %12 = vector.load %arg6[%c0_7, %c0_8] : memref<1x256xf32, #tpu.memory_space<vmem>>, vector<1x256xf32>
    %cst_9 = arith.constant dense<0.000000e+00> : vector<256xf32>
    %13 = vector.multi_reduction <add>, %5, %cst_9 [0] : vector<128x256xf32> to vector<256xf32>
    %14 = vector.shape_cast %13 : vector<256xf32> to vector<1x256xf32>
    %15 = arith.addf %12, %14 : vector<1x256xf32>
    %c0_10 = arith.constant 0 : index
    %c0_11 = arith.constant 0 : index
    %16 = vector.load %arg6[%c0_10, %c0_11] : memref<1x256xf32, #tpu.memory_space<vmem>>, vector<1x256xf32>
    tpu.vector_store %arg6[%c0_10, %c0_11], %15 {strides = array<i32>} : memref<1x256xf32, #tpu.memory_space<vmem>>, vector<1x256xf32>,
    %c3_i32 = arith.constant 3 : i32
    %17 = arith.cmpi eq, %arg1, %c3_i32 : i32
    %18 = arith.extui %17 : i1 to i32
    %c0_i32_12 = arith.constant 0 : i32
    %19 = arith.cmpi ne, %18, %c0_i32_12 : i32
    scf.if %19 {
      %c0_13 = arith.constant 0 : index
      %c0_14 = arith.constant 0 : index
      %20 = vector.load %arg6[%c0_13, %c0_14] : memref<1x256xf32, #tpu.memory_space<vmem>>, vector<1x256xf32>
      %cst_15 = arith.constant 2.000000e-03 : f32
      %21 = vector.broadcast %cst_15 : f32 to vector<1x256xf32>
      %22 = arith.mulf %20, %21 : vector<1x256xf32>
      %c0_16 = arith.constant 0 : index
      %23 = arith.index_cast %4 : i32 to index
      %24 = vector.load %arg6[%c0_16, %23] : memref<1x256xf32, #tpu.memory_space<vmem>>, vector<1x128xf32>
      %cst_17 = arith.constant 2.000000e-03 : f32
      %25 = vector.broadcast %cst_17 : f32 to vector<1x128xf32>
      %26 = arith.mulf %24, %25 : vector<1x128xf32>
      %c0_18 = arith.constant 0 : index
      %c0_19 = arith.constant 0 : index
      %27 = vector.load %arg5[%c0_18, %c0_19] : memref<256x128xf32, #tpu.memory_space<vmem>>, vector<256x128xf32>
      %cst_20 = arith.constant 2.000000e-03 : f32
      %28 = vector.broadcast %cst_20 : f32 to vector<256x128xf32>
      %29 = arith.mulf %27, %28 : vector<256x128xf32>
      %cst_21 = arith.constant dense<0.000000e+00> : vector<256x128xf32>
      %30 = tpu.matmul %22, %26, %cst_21 {dimension_numbers = #tpu.dot_dimension_numbers<[0], [0], [1], [1], [0, 1, 1, 1], [], []>} : vector<1x256xf32>, vector<1x128xf32>, vector<256x128xf32> -> vector<256x128xf32>
      %31 = arith.subf %29, %30 : vector<256x128xf32>
      %c0_22 = arith.constant 0 : index
      %c0_23 = arith.constant 0 : index
      %32 = vector.load %arg3[%c0_22, %c0_23] : memref<1x128xf32, #tpu.memory_space<vmem>>, vector<1x128xf32>
      tpu.vector_store %arg3[%c0_22, %c0_23], %26 {strides = array<i32>} : memref<1x128xf32, #tpu.memory_space<vmem>>, vector<1x128xf32>,
      %33 = arith.mulf %31, %31 : vector<256x128xf32>
      %34 = vector.shape_cast %33 : vector<256x128xf32> to vector<1x256x128xf32>
      %cst_24 = arith.constant dense<0.000000e+00> : vector<1xf32>
      %35 = vector.multi_reduction <add>, %34, %cst_24 [1, 2] : vector<1x256x128xf32> to vector<1xf32>
      %36 = vector.shape_cast %35 : vector<1xf32> to vector<1x1x1xf32>
      %37 = vector.extract %36[0, 0, 0] : f32 from vector<1x1x1xf32>
      %38 = vector.broadcast %37 : f32 to vector<1x1xf32>
      %c0_25 = arith.constant 0 : index
      %c0_26 = arith.constant 0 : index
      %c0_27 = arith.constant 0 : index
      %39 = vector.load %arg4[%c0_25, %c0_26, %c0_27] : memref<1x1x1xf32, #tpu.memory_space<vmem>>, vector<1x1x1xf32>
      %40 = vector.shape_cast %39 : vector<1x1x1xf32> to vector<1x1xf32>
      %41 = vector.shape_cast %38 : vector<1x1xf32> to vector<1x1x1xf32>
      tpu.vector_store %arg4[%c0_25, %c0_26, %c0_27], %41 {strides = array<i32>} : memref<1x1x1xf32, #tpu.memory_space<vmem>>, vector<1x1x1xf32>,
    } else {
    }
    return
  }
  func.func @transform_0(%arg0: i32, %arg1: i32) -> (i32, i32) {
    %c0_i32 = arith.constant 0 : i32
    %c0_i32_0 = arith.constant 0 : i32
    return %arg1, %c0_i32 : i32, i32
  }
  func.func @transform_1(%arg0: i32, %arg1: i32) -> (i32, i32) {
    %c0_i32 = arith.constant 0 : i32
    %c0_i32_0 = arith.constant 0 : i32
    return %c0_i32, %arg0 : i32, i32
  }
  func.func @transform_2(%arg0: i32, %arg1: i32) -> (i32, i32, i32) {
    %c0_i32 = arith.constant 0 : i32
    %c0_i32_0 = arith.constant 0 : i32
    %c0_i32_1 = arith.constant 0 : i32
    return %arg0, %c0_i32, %c0_i32_0 : i32, i32, i32
  }
}

</mosaic_0001>

<llo_original>
// kernel: tpu_custom_call.1
$region0: #{tpu_custom_call.1}
  #allocation0 [shape = 'u32[]', space=smem, size = 0x4, offset = 0x4, fixed_abs, tag = 'smem constant byte address 0x4 - core index']
  #allocation1 [shape = 'u32[72,128]{1,0:T(1,128)}', space=vmem, size = 0x9000, scoped, tag = 'internal scratch']
  #allocation2 [shape = 'f32[256,128]{1,0:T(8,128)}', space=vmem, size = 0x20000, scoped, tag = 'scratch operand']
  #allocation3 [shape = 'f32[1,256]{1,0:T(1,128)}', space=vmem, size = 0x400, scoped, tag = 'scratch operand']
  %s0 = inlined_call_operand.hbm [shape: f32[512,256], index: 0, kind: input, shape index: {}]
  %s1 = inlined_call_operand.hbm [shape: f32[1,256], index: 1, kind: output, shape index: {0}]
  %s2 = inlined_call_operand.vmem [shape: f32[2,1,1], index: 2, kind: output, shape index: {1}]
  %3 = xla_tuple %s1, %s2
  %s4 = sld [smem:[#allocation0]]
  $region57: #{tpu_custom_call.1} parent=0
    _
  %s6 = ssub.s32 1, %s4
  %s7 = scalar_select 0, %s6, %s4
  $region1: #{tpu_custom_call.1} parent=0
    #allocation4 [shape = 'u8[262144]{0}', space=vmem, size = 0x40000, scoped, tag = 'input window, operand 0']
    #allocation5 [shape = 's32[2]{0}', space=sflag, size = 0x8, scoped, tag = 'scoped memory for tpu_custom_call.1']
    #allocation6 [shape = 's32[2]{0}', space=sflag, size = 0x8, scoped, tag = 'scoped memory for tpu_custom_call.1']
    #allocation7 [shape = 'u8[1024]{0}', space=vmem, size = 0x400, scoped, tag = 'output window, operand 0']
    %8 = vsyncpa [#allocation5], 0
    %s9 = scalar_lea.sflag [#allocation5], 1
    %10 = vsyncpa %s9, 0
    %11 = vsyncpa [#allocation6], 0
    %s12 = scalar_lea.sflag [#allocation6], 1
    %13 = vsyncpa %s12, 0
    loop: start=0, step=1, limit=10
    $region2: #{tpu_custom_call.1} parent=1 // loop_pre_header
      _
    $region3: #{tpu_custom_call.1} parent=1 // loop_header
      %s15 = sphi 0, %s19
      %p16 = scmp.ge.s32.totalorder %s15, 10
      %s22 = sphi 0, %s34
      %s23 = sphi 0, %s30
      %s24 = sphi 0, %s22
      %s25 = sphi 0, %s23
      %s26 = sphi 0, %s24
      %s27 = sphi 0, %s25
      %s37 = sphi 0, %s39
      %s40 = sphi 0, %s37
      %s41 = sphi 0, %s40
      %s57 = sphi 0, %s41
      %s63 = sphi 0, %s65
      %s66 = sphi 0, %s63
      %s67 = sphi 0, %s66
      %s83 = sphi 0, %s67
      %s89 = sphi 0, %s91
      %s92 = sphi 0, %s89
      %s93 = sphi 0, %s92
      %s109 = sphi 0, %s93
    $region4: #{tpu_custom_call.1} parent=1 // loop_header_branch
      %18 = sbr.rel (%p16) target = $region8
    $region5: #{tpu_custom_call.1} parent=1 // loop_body
      %s20 = ssub.s32 %s15, 1
      %s21 = ssub.s32 %s15, 2
      %s28 = sadd.s32 1, %s23
      %p29 = scmp.ge.s32.totalorder %s28, 4
      %s30 = scalar_select %p29, 0, %s28
      %s31 = sadd.s32 1, %s22
      %s32 = scalar_select %p29, %s31, %s22
      %p33 = scmp.ge.s32.totalorder %s32, 2
      %s34 = scalar_select %p33, 0, %s32
      %s35 = ssub.s32 %s23, %s30
      %p36 = scmp.eq.s32.totalorder %s35, 0
      %s38 = sadd.s32 %s37, 1
      %s39 = scalar_select %p36, %s37, %s38
      %p42 = pneg %p36
      %p43 = scmp.eq.s32.totalorder %s15, 7
      %p44 = por %p42, %p43
      %p45 = scmp.ne.s32.totalorder %s37, %s40
      %p46 = scmp.eq.s32.totalorder %s15, 0
      %p47 = por %p45, %p46
      %p48 = scmp.ne.s32.totalorder %s37, %s40
      %p49 = scmp.eq.s32.totalorder %s20, 7
      %p50 = por %p48, %p49
      %p51 = scmp.ne.s32.totalorder %s40, %s41
      %p52 = scmp.eq.s32.totalorder %s20, 0
      %p53 = por %p51, %p52
      %p54 = scmp.ne.s32.totalorder %s40, %s41
      %p55 = scmp.eq.s32.totalorder %s21, 7
      %p56 = por %p54, %p55
      %p58 = scmp.ne.s32.totalorder %s41, %s57
      %p59 = scmp.eq.s32.totalorder %s21, 0
      %p60 = por %p58, %p59
      %s61 = ssub.s32 %s22, %s34
      %p62 = scmp.eq.s32.totalorder %s61, 0
      %s64 = sadd.s32 %s63, 1
      %s65 = scalar_select %p62, %s63, %s64
      %p68 = pneg %p62
      %p69 = scmp.eq.s32.totalorder %s15, 7
      %p70 = por %p68, %p69
      %p71 = scmp.ne.s32.totalorder %s63, %s66
      %p72 = scmp.eq.s32.totalorder %s15, 0
      %p73 = por %p71, %p72
      %p74 = scmp.ne.s32.totalorder %s63, %s66
      %p75 = scmp.eq.s32.totalorder %s20, 7
      %p76 = por %p74, %p75
      %p77 = scmp.ne.s32.totalorder %s66, %s67
      %p78 = scmp.eq.s32.totalorder %s20, 0
      %p79 = por %p77, %p78
      %p80 = scmp.ne.s32.totalorder %s66, %s67
      %p81 = scmp.eq.s32.totalorder %s21, 7
      %p82 = por %p80, %p81
      %p84 = scmp.ne.s32.totalorder %s67, %s83
      %p85 = scmp.eq.s32.totalorder %s21, 0
      %p86 = por %p84, %p85
      %s87 = ssub.s32 %s22, %s34
      %p88 = scmp.eq.s32.totalorder %s87, 0
      %s90 = sadd.s32 %s89, 1
      %s91 = scalar_select %p88, %s89, %s90
      %p94 = pneg %p88
      %p95 = scmp.eq.s32.totalorder %s15, 7
      %p96 = por %p94, %p95
      %p97 = scmp.ne.s32.totalorder %s89, %s92
      %p98 = scmp.eq.s32.totalorder %s15, 0
      %p99 = por %p97, %p98
      %p100 = scmp.ne.s32.totalorder %s89, %s92
      %p101 = scmp.eq.s32.totalorder %s20, 7
      %p102 = por %p100, %p101
      %p103 = scmp.ne.s32.totalorder %s92, %s93
      %p104 = scmp.eq.s32.totalorder %s20, 0
      %p105 = por %p103, %p104
      %p106 = scmp.ne.s32.totalorder %s92, %s93
      %p107 = scmp.eq.s32.totalorder %s21, 7
      %p108 = por %p106, %p107
      %p110 = scmp.ne.s32.totalorder %s93, %s109
      %p111 = scmp.eq.s32.totalorder %s21, 0
      %p112 = por %p110, %p111
      %p113 = scmp.le.s32.totalorder 1, %s15
      %p114 = scmp.lt.s32.totalorder %s15, 9
      %p115 = pnand %p113, %p114
      %p116 = pneg %p115
      // Predicated region
      $region9: #{tpu_custom_call.1} parent=5 // pred_check
        _
      $region10: #{tpu_custom_call.1} parent=5 // pred_check_branch
        %118 = sbr.rel (%p115) target = $region12
      $region11: #{tpu_custom_call.1} parent=5 // pred_region
        %s119 = ssub.s32 %s15, 1
      $region12: #{tpu_custom_call.1} parent=5 // pred_fallthru
        _
      %p120 = scmp.lt.s32.totalorder %s15, 8
      // Predicated region
      $region13: #{tpu_custom_call.1} parent=5 // pred_check
        %p121 = pneg %p120
      $region14: #{tpu_custom_call.1} parent=5 // pred_check_branch
        %123 = sbr.rel (%p121) target = $region16
      $region15: #{tpu_custom_call.1} parent=5 // pred_region
        // Predicated region
        $region17: #{tpu_custom_call.1} parent=15 // pred_check
          %p124 = pneg %p47
        $region18: #{tpu_custom_call.1} parent=15 // pred_check_branch
          %126 = sbr.rel (%p124) target = $region20
        $region19: #{tpu_custom_call.1} parent=15 // pred_region
          %s127 = sand.u32 %s37, 1
          %s128 = scalar_lea.sflag [#allocation5], %s127
          %s129 = sand.u32 %s37, 1
          %s130 = smul.addr %s129, 256
          %s131 = scalar_lea.vmem [#allocation4], %s130
          %s132 = smul.u32 16, %s23
          %134 = vsyncadd %s128, 0
          %s135 = smul.addr %s132, 2
          %s136 = smul.addr %s135, 8
          %s137 = scalar_lea.hbm %s0, %s136
          %s138 = sshll.u32 %s137, 4
          %s139 = int_to_ptr.hbm [resolvable:$true] %s138
          %s140 = sshll.u32 %s131, 4
          %s141 = int_to_ptr.vmem [resolvable:$true] %s140
          %146 = dma.hbm_to_vmem [thread:$0]  %s139, 4096, %s141, %s128, 256, 256, 16
        $region20: #{tpu_custom_call.1} parent=15 // pred_fallthru
          _
      $region16: #{tpu_custom_call.1} parent=5 // pred_fallthru
        _
      %p147 = scmp.le.s32.totalorder 1, %s15
      %p148 = scmp.lt.s32.totalorder %s15, 9
      %p149 = pnand %p147, %p148
      %p150 = pneg %p149
      // Predicated region
      $region21: #{tpu_custom_call.1} parent=5 // pred_check
        _
      $region22: #{tpu_custom_call.1} parent=5 // pred_check_branch
        %152 = sbr.rel (%p149) target = $region24
      $region23: #{tpu_custom_call.1} parent=5 // pred_region
        %s153 = ssub.s32 %s15, 1
        %s154 = sand.u32 %s40, 1
        %s155 = scalar_lea.sflag [#allocation5], %s154
        %s156 = sand.u32 %s40, 1
        %s157 = smul.addr %s156, 256
        %s158 = scalar_lea.vmem [#allocation4], %s157
        // Predicated region
        $region25: #{tpu_custom_call.1} parent=23 // pred_check
          %p159 = pneg %p53
        $region26: #{tpu_custom_call.1} parent=23 // pred_check_branch
          %161 = sbr.rel (%p159) target = $region28
        $region27: #{tpu_custom_call.1} parent=23 // pred_region
          %163 = dma.done %s155, 4096
        $region28: #{tpu_custom_call.1} parent=23 // pred_fallthru
          _
        %s164 = sand.u32 %s40, 1
        %s165 = scalar_lea.sflag [#allocation5], %s164
        %s166 = sand.u32 %s40, 1
        %s167 = smul.addr %s166, 256
        %s168 = scalar_lea.vmem [#allocation4], %s167
        %p169 = pneg %p53
        %p170 = pneg %p50
        %p171 = pneg %p79
        %p172 = pneg %p76
        %s173 = sand.u32 %s66, 1
        %s174 = scalar_lea.sflag [#allocation6], %s173
        %s175 = sand.u32 %s66, 1
        %s176 = scalar_lea.vmem [#allocation7], %s175
        %p177 = pneg %p105
        %p178 = pneg %p102
        %p179 = scmp.lt.s32.totalorder %s24, 1
        %s180 = scalar_select %p179, %s24, 1
        %s181 = scalar_lea.vmem %s2, %s180
        %s182 = smul.u32 16, %s25
        %p183 = scmp.lt.s32.totalorder %s24, 1
        %s184 = scalar_select %p183, %s24, 1
        %s185 = scalar_lea.vmem %s2, %s184
        %p186 = scmp.eq.s32.totalorder %s25, 0
        // Predicated region
        $region29: #{tpu_custom_call.1} parent=23 // pred_check
          %p187 = pneg %p186
        $region30: #{tpu_custom_call.1} parent=23 // pred_check_branch
          %189 = sbr.rel (%p187) target = $region32
        $region31: #{tpu_custom_call.1} parent=23 // pred_region
          %190 = vst [vmem:[#allocation2] sm:$0xff] 0.0
          %191 = vst [vmem:[#allocation2 + $0x8] sm:$0xff] 0.0
          %192 = vst [vmem:[#allocation2 + $0x10] sm:$0xff] 0.0
          %193 = vst [vmem:[#allocation2 + $0x18] sm:$0xff] 0.0
          %194 = vst [vmem:[#allocation2 + $0x20] sm:$0xff] 0.0
          %195 = vst [vmem:[#allocation2 + $0x28] sm:$0xff] 0.0
          %196 = vst [vmem:[#allocation2 + $0x30] sm:$0xff] 0.0
          %197 = vst [vmem:[#allocation2 + $0x38] sm:$0xff] 0.0
          %198 = vst [vmem:[#allocation2 + $0x40] sm:$0xff] 0.0
          %199 = vst [vmem:[#allocation2 + $0x48] sm:$0xff] 0.0
          %200 = vst [vmem:[#allocation2 + $0x50] sm:$0xff] 0.0
          %201 = vst [vmem:[#allocation2 + $0x58] sm:$0xff] 0.0
          %202 = vst [vmem:[#allocation2 + $0x60] sm:$0xff] 0.0
          %203 = vst [vmem:[#allocation2 + $0x68] sm:$0xff] 0.0
          %204 = vst [vmem:[#allocation2 + $0x70] sm:$0xff] 0.0
          %205 = vst [vmem:[#allocation2 + $0x78] sm:$0xff] 0.0
          %206 = vst [vmem:[#allocation2 + $0x80] sm:$0xff] 0.0
          %207 = vst [vmem:[#allocation2 + $0x88] sm:$0xff] 0.0
          %208 = vst [vmem:[#allocation2 + $0x90] sm:$0xff] 0.0
          %209 = vst [vmem:[#allocation2 + $0x98] sm:$0xff] 0.0
          %210 = vst [vmem:[#allocation2 + $0xa0] sm:$0xff] 0.0
          %211 = vst [vmem:[#allocation2 + $0xa8] sm:$0xff] 0.0
          %212 = vst [vmem:[#allocation2 + $0xb0] sm:$0xff] 0.0
          %213 = vst [vmem:[#allocation2 + $0xb8] sm:$0xff] 0.0
          %214 = vst [vmem:[#allocation2 + $0xc0] sm:$0xff] 0.0
          %215 = vst [vmem:[#allocation2 + $0xc8] sm:$0xff] 0.0
          %216 = vst [vmem:[#allocation2 + $0xd0] sm:$0xff] 0.0
          %217 = vst [vmem:[#allocation2 + $0xd8] sm:$0xff] 0.0
          %218 = vst [vmem:[#allocation2 + $0xe0] sm:$0xff] 0.0
          %219 = vst [vmem:[#allocation2 + $0xe8] sm:$0xff] 0.0
          %220 = vst [vmem:[#allocation2 + $0xf0] sm:$0xff] 0.0
          %221 = vst [vmem:[#allocation2 + $0xf8] sm:$0xff] 0.0
          %v222 = vlaneseq
          %vm223 = vcmp.ge.s32.totalorder %v222, 0
          %vm224 = vcmp.lt.s32.totalorder %v222, 256
          %vm225 = vmand %vm223, %vm224
          %226 = vst.msk [vmem:[#allocation3] sm:$0x3] %vm225, 0.0
        $region32: #{tpu_custom_call.1} parent=23 // pred_fallthru
          _
        %s227 = smul.u32 %s24, 128
        %v228 = vld [vmem:[%s158] sm:$0xff]
        %v229 = vld [vmem:[%s158 + $0x8] sm:$0xff]
        %v230 = vld [vmem:[%s158 + $0x10] sm:$0xff]
        %v231 = vld [vmem:[%s158 + $0x18] sm:$0xff]
        %v232 = vld [vmem:[%s158 + $0x20] sm:$0xff]
        %v233 = vld [vmem:[%s158 + $0x28] sm:$0xff]
        %v234 = vld [vmem:[%s158 + $0x30] sm:$0xff]
        %v235 = vld [vmem:[%s158 + $0x38] sm:$0xff]
        %v236 = vld [vmem:[%s158 + $0x40] sm:$0xff]
        %v237 = vld [vmem:[%s158 + $0x48] sm:$0xff]
        %v238 = vld [vmem:[%s158 + $0x50] sm:$0xff]
        %v239 = vld [vmem:[%s158 + $0x58] sm:$0xff]
        %v240 = vld [vmem:[%s158 + $0x60] sm:$0xff]
        %v241 = vld [vmem:[%s158 + $0x68] sm:$0xff]
        %v242 = vld [vmem:[%s158 + $0x70] sm:$0xff]
        %v243 = vld [vmem:[%s158 + $0x78] sm:$0xff]
        %v244 = vld [vmem:[%s158 + $0x80] sm:$0xff]
        %v245 = vld [vmem:[%s158 + $0x88] sm:$0xff]
        %v246 = vld [vmem:[%s158 + $0x90] sm:$0xff]
        %v247 = vld [vmem:[%s158 + $0x98] sm:$0xff]
        %v248 = vld [vmem:[%s158 + $0xa0] sm:$0xff]
        %v249 = vld [vmem:[%s158 + $0xa8] sm:$0xff]
        %v250 = vld [vmem:[%s158 + $0xb0] sm:$0xff]
        %v251 = vld [vmem:[%s158 + $0xb8] sm:$0xff]
        %v252 = vld [vmem:[%s158 + $0xc0] sm:$0xff]
        %v253 = vld [vmem:[%s158 + $0xc8] sm:$0xff]
        %v254 = vld [vmem:[%s158 + $0xd0] sm:$0xff]
        %v255 = vld [vmem:[%s158 + $0xd8] sm:$0xff]
        %v256 = vld [vmem:[%s158 + $0xe0] sm:$0xff]
        %v257 = vld [vmem:[%s158 + $0xe8] sm:$0xff]
        %v258 = vld [vmem:[%s158 + $0xf0] sm:$0xff]
        %v259 = vld [vmem:[%s158 + $0xf8] sm:$0xff]
        %s260 = sshra.s32 %s227, 7
        %s261 = sand.u32 %s227, 127
        %s262 = smul.addr %s260, 8
        %s263 = scalar_lea.vmem %s158, %s262 [#allocation4]
        %v264 = vld [vmem:[%s263] sm:$0xff]
        %v265 = vld [vmem:[%s263 + $0x10] sm:$0xff]
        %v266 = vld [vmem:[%s263 + $0x20] sm:$0xff]
        %v267 = vld [vmem:[%s263 + $0x30] sm:$0xff]
        %v268 = vld [vmem:[%s263 + $0x40] sm:$0xff]
        %v269 = vld [vmem:[%s263 + $0x50] sm:$0xff]
        %v270 = vld [vmem:[%s263 + $0x60] sm:$0xff]
        %v271 = vld [vmem:[%s263 + $0x70] sm:$0xff]
        %v272 = vld [vmem:[%s263 + $0x80] sm:$0xff]
        %v273 = vld [vmem:[%s263 + $0x90] sm:$0xff]
        %v274 = vld [vmem:[%s263 + $0xa0] sm:$0xff]
        %v275 = vld [vmem:[%s263 + $0xb0] sm:$0xff]
        %v276 = vld [vmem:[%s263 + $0xc0] sm:$0xff]
        %v277 = vld [vmem:[%s263 + $0xd0] sm:$0xff]
        %v278 = vld [vmem:[%s263 + $0xe0] sm:$0xff]
        %v279 = vld [vmem:[%s263 + $0xf0] sm:$0xff]
        %v280 = vld [vmem:[#allocation2] sm:$0xff]
        %v281 = vld [vmem:[#allocation2 + $0x8] sm:$0xff]
        %v282 = vld [vmem:[#allocation2 + $0x10] sm:$0xff]
        %v283 = vld [vmem:[#allocation2 + $0x18] sm:$0xff]
        %v284 = vld [vmem:[#allocation2 + $0x20] sm:$0xff]
        %v285 = vld [vmem:[#allocation2 + $0x28] sm:$0xff]
        %v286 = vld [vmem:[#allocation2 + $0x30] sm:$0xff]
        %v287 = vld [vmem:[#allocation2 + $0x38] sm:$0xff]
        %v288 = vld [vmem:[#allocation2 + $0x40] sm:$0xff]
        %v289 = vld [vmem:[#allocation2 + $0x48] sm:$0xff]
        %v290 = vld [vmem:[#allocation2 + $0x50] sm:$0xff]
        %v291 = vld [vmem:[#allocation2 + $0x58] sm:$0xff]
        %v292 = vld [vmem:[#allocation2 + $0x60] sm:$0xff]
        %v293 = vld [vmem:[#allocation2 + $0x68] sm:$0xff]
        %v294 = vld [vmem:[#allocation2 + $0x70] sm:$0xff]
        %v295 = vld [vmem:[#allocation2 + $0x78] sm:$0xff]
        %v296 = vld [vmem:[#allocation2 + $0x80] sm:$0xff]
        %v297 = vld [vmem:[#allocation2 + $0x88] sm:$0xff]
        %v298 = vld [vmem:[#allocation2 + $0x90] sm:$0xff]
        %v299 = vld [vmem:[#allocation2 + $0x98] sm:$0xff]
        %v300 = vld [vmem:[#allocation2 + $0xa0] sm:$0xff]
        %v301 = vld [vmem:[#allocation2 + $0xa8] sm:$0xff]
        %v302 = vld [vmem:[#allocation2 + $0xb0] sm:$0xff]
        %v303 = vld [vmem:[#allocation2 + $0xb8] sm:$0xff]
        %v304 = vld [vmem:[#allocation2 + $0xc0] sm:$0xff]
        %v305 = vld [vmem:[#allocation2 + $0xc8] sm:$0xff]
        %v306 = vld [vmem:[#allocation2 + $0xd0] sm:$0xff]
        %v307 = vld [vmem:[#allocation2 + $0xd8] sm:$0xff]
        %v308 = vld [vmem:[#allocation2 + $0xe0] sm:$0xff]
        %v309 = vld [vmem:[#allocation2 + $0xe8] sm:$0xff]
        %v310 = vld [vmem:[#allocation2 + $0xf0] sm:$0xff]
        %v311 = vld [vmem:[#allocation2 + $0xf8] sm:$0xff]
        %312 = vxpose.xlu0.b32.start [1/16] %v228, 128
        %313 = vxpose.xlu0.b32.cont [2/16] %v230, 128
        %314 = vxpose.xlu0.b32.cont [3/16] %v232, 128
        %315 = vxpose.xlu0.b32.cont [4/16] %v234, 128
        %316 = vxpose.xlu0.b32.cont [5/16] %v236, 128
        %317 = vxpose.xlu0.b32.cont [6/16] %v238, 128
        %318 = vxpose.xlu0.b32.cont [7/16] %v240, 128
        %319 = vxpose.xlu0.b32.cont [8/16] %v242, 128
        %320 = vxpose.xlu0.b32.cont [9/16] %v244, 128
        %321 = vxpose.xlu0.b32.cont [10/16] %v246, 128
        %322 = vxpose.xlu0.b32.cont [11/16] %v248, 128
        %323 = vxpose.xlu0.b32.cont [12/16] %v250, 128
        %324 = vxpose.xlu0.b32.cont [13/16] %v252, 128
        %325 = vxpose.xlu0.b32.cont [14/16] %v254, 128
        %326 = vxpose.xlu0.b32.cont [15/16] %v256, 128
        %327 = vxpose.xlu0.b32.end [16/16] %v258, 128
        %v328 = vpop.trf.xlu0
        %v329 = vpop.trf.xlu0
        %v330 = vpop.trf.xlu0
        %v331 = vpop.trf.xlu0
        %v332 = vpop.trf.xlu0
        %v333 = vpop.trf.xlu0
        %v334 = vpop.trf.xlu0
        %v335 = vpop.trf.xlu0
        %v336 = vpop.trf.xlu0
        %v337 = vpop.trf.xlu0
        %v338 = vpop.trf.xlu0
        %v339 = vpop.trf.xlu0
        %v340 = vpop.trf.xlu0
        %v341 = vpop.trf.xlu0
        %v342 = vpop.trf.xlu0
        %v343 = vpop.trf.xlu0
        %344 = vxpose.xlu0.b32.start [1/16] %v229, 128
        %345 = vxpose.xlu0.b32.cont [2/16] %v231, 128
        %346 = vxpose.xlu0.b32.cont [3/16] %v233, 128
        %347 = vxpose.xlu0.b32.cont [4/16] %v235, 128
        %348 = vxpose.xlu0.b32.cont [5/16] %v237, 128
        %349 = vxpose.xlu0.b32.cont [6/16] %v239, 128
        %350 = vxpose.xlu0.b32.cont [7/16] %v241, 128
        %351 = vxpose.xlu0.b32.cont [8/16] %v243, 128
        %352 = vxpose.xlu0.b32.cont [9/16] %v245, 128
        %353 = vxpose.xlu0.b32.cont [10/16] %v247, 128
        %354 = vxpose.xlu0.b32.cont [11/16] %v249, 128
        %355 = vxpose.xlu0.b32.cont [12/16] %v251, 128
        %356 = vxpose.xlu0.b32.cont [13/16] %v253, 128
        %357 = vxpose.xlu0.b32.cont [14/16] %v255, 128
        %358 = vxpose.xlu0.b32.cont [15/16] %v257, 128
        %359 = vxpose.xlu0.b32.end [16/16] %v259, 128
        %v360 = vpop.trf.xlu0
        %v361 = vpop.trf.xlu0
        %v362 = vpop.trf.xlu0
        %v363 = vpop.trf.xlu0
        %v364 = vpop.trf.xlu0
        %v365 = vpop.trf.xlu0
        %v366 = vpop.trf.xlu0
        %v367 = vpop.trf.xlu0
        %v368 = vpop.trf.xlu0
        %v369 = vpop.trf.xlu0
        %v370 = vpop.trf.xlu0
        %v371 = vpop.trf.xlu0
        %v372 = vpop.trf.xlu0
        %v373 = vpop.trf.xlu0
        %v374 = vpop.trf.xlu0
        %v375 = vpop.trf.xlu0
        %376 = vmatpush.msra.mxu0 %v279
        %377 = vmatpush.msra.mxu0 %v278
        %378 = vmatpush.msra.mxu0 %v277
        %379 = vmatpush.msra.mxu0 %v276
        %380 = vmatpush.msra.mxu0 %v275
        %381 = vmatpush.msra.mxu0 %v274
        %382 = vmatpush.msra.mxu0 %v273
        %383 = vmatpush.msra.mxu0 %v272
        %384 = vmatpush.msra.mxu0 %v271
        %385 = vmatpush.msra.mxu0 %v270
        %386 = vmatpush.msra.mxu0 %v269
        %387 = vmatpush.msra.mxu0 %v268
        %388 = vmatpush.msra.mxu0 %v267
        %389 = vmatpush.msra.mxu0 %v266
        %390 = vmatpush.msra.mxu0 %v265
        %391 = vmatpush.msra.mxu0 %v264
        %392 = vmatmul.f32.gmra.mxu0 %v328
        %v393 = vpop.f32.mrf.mxu0
        %v394 = vadd.f32 0.0, %v393
        %395 = vmatmul.f32.gmra.mxu0 %v329
        %v396 = vpop.f32.mrf.mxu0
        %v397 = vadd.f32 0.0, %v396
        %398 = vmatmul.f32.gmra.mxu0 %v330
        %v399 = vpop.f32.mrf.mxu0
        %v400 = vadd.f32 0.0, %v399
        %401 = vmatmul.f32.gmra.mxu0 %v331
        %v402 = vpop.f32.mrf.mxu0
        %v403 = vadd.f32 0.0, %v402
        %404 = vmatmul.f32.gmra.mxu0 %v332
        %v405 = vpop.f32.mrf.mxu0
        %v406 = vadd.f32 0.0, %v405
        %407 = vmatmul.f32.gmra.mxu0 %v333
        %v408 = vpop.f32.mrf.mxu0
        %v409 = vadd.f32 0.0, %v408
        %410 = vmatmul.f32.gmra.mxu0 %v334
        %v411 = vpop.f32.mrf.mxu0
        %v412 = vadd.f32 0.0, %v411
        %413 = vmatmul.f32.gmra.mxu0 %v335
        %v414 = vpop.f32.mrf.mxu0
        %v415 = vadd.f32 0.0, %v414
        %416 = vmatmul.f32.gmra.mxu0 %v336
        %v417 = vpop.f32.mrf.mxu0
        %v418 = vadd.f32 0.0, %v417
        %419 = vmatmul.f32.gmra.mxu0 %v337
        %v420 = vpop.f32.mrf.mxu0
        %v421 = vadd.f32 0.0, %v420
        %422 = vmatmul.f32.gmra.mxu0 %v338
        %v423 = vpop.f32.mrf.mxu0
        %v424 = vadd.f32 0.0, %v423
        %425 = vmatmul.f32.gmra.mxu0 %v339
        %v426 = vpop.f32.mrf.mxu0
        %v427 = vadd.f32 0.0, %v426
        %428 = vmatmul.f32.gmra.mxu0 %v340
        %v429 = vpop.f32.mrf.mxu0
        %v430 = vadd.f32 0.0, %v429
        %431 = vmatmul.f32.gmra.mxu0 %v341
        %v432 = vpop.f32.mrf.mxu0
        %v433 = vadd.f32 0.0, %v432
        %434 = vmatmul.f32.gmra.mxu0 %v342
        %v435 = vpop.f32.mrf.mxu0
        %v436 = vadd.f32 0.0, %v435
        %437 = vmatmul.f32.gmra.mxu0 %v343
        %v438 = vpop.f32.mrf.mxu0
        %v439 = vadd.f32 0.0, %v438
        %440 = vmatmul.f32.gmra.mxu0 %v360
        %v441 = vpop.f32.mrf.mxu0
        %v442 = vadd.f32 0.0, %v441
        %443 = vmatmul.f32.gmra.mxu0 %v361
        %v444 = vpop.f32.mrf.mxu0
        %v445 = vadd.f32 0.0, %v444
        %446 = vmatmul.f32.gmra.mxu0 %v362
        %v447 = vpop.f32.mrf.mxu0
        %v448 = vadd.f32 0.0, %v447
        %449 = vmatmul.f32.gmra.mxu0 %v363
        %v450 = vpop.f32.mrf.mxu0
        %v451 = vadd.f32 0.0, %v450
        %452 = vmatmul.f32.gmra.mxu0 %v364
        %v453 = vpop.f32.mrf.mxu0
        %v454 = vadd.f32 0.0, %v453
        %455 = vmatmul.f32.gmra.mxu0 %v365
        %v456 = vpop.f32.mrf.mxu0
        %v457 = vadd.f32 0.0, %v456
        %458 = vmatmul.f32.gmra.mxu0 %v366
        %v459 = vpop.f32.mrf.mxu0
        %v460 = vadd.f32 0.0, %v459
        %461 = vmatmul.f32.gmra.mxu0 %v367
        %v462 = vpop.f32.mrf.mxu0
        %v463 = vadd.f32 0.0, %v462
        %464 = vmatmul.f32.gmra.mxu0 %v368
        %v465 = vpop.f32.mrf.mxu0
        %v466 = vadd.f32 0.0, %v465
        %467 = vmatmul.f32.gmra.mxu0 %v369
        %v468 = vpop.f32.mrf.mxu0
        %v469 = vadd.f32 0.0, %v468
        %470 = vmatmul.f32.gmra.mxu0 %v370
        %v471 = vpop.f32.mrf.mxu0
        %v472 = vadd.f32 0.0, %v471
        %473 = vmatmul.f32.gmra.mxu0 %v371
        %v474 = vpop.f32.mrf.mxu0
        %v475 = vadd.f32 0.0, %v474
        %476 = vmatmul.f32.gmra.mxu0 %v372
        %v477 = vpop.f32.mrf.mxu0
        %v478 = vadd.f32 0.0, %v477
        %479 = vmatmul.f32.gmra.mxu0 %v373
        %v480 = vpop.f32.mrf.mxu0
        %v481 = vadd.f32 0.0, %v480
        %482 = vmatmul.f32.gmra.mxu0 %v374
        %v483 = vpop.f32.mrf.mxu0
        %v484 = vadd.f32 0.0, %v483
        %485 = vmatmul.f32.gmra.mxu0 %v375
        %v486 = vpop.f32.mrf.mxu0
        %v487 = vadd.f32 0.0, %v486
        %488 = vdwg.mxu0
        %v489 = vadd.f32 %v280, %v394
        %v490 = vadd.f32 %v281, %v397
        %v491 = vadd.f32 %v282, %v400
        %v492 = vadd.f32 %v283, %v403
        %v493 = vadd.f32 %v284, %v406
        %v494 = vadd.f32 %v285, %v409
        %v495 = vadd.f32 %v286, %v412
        %v496 = vadd.f32 %v287, %v415
        %v497 = vadd.f32 %v288, %v418
        %v498 = vadd.f32 %v289, %v421
        %v499 = vadd.f32 %v290, %v424
        %v500 = vadd.f32 %v291, %v427
        %v501 = vadd.f32 %v292, %v430
        %v502 = vadd.f32 %v293, %v433
        %v503 = vadd.f32 %v294, %v436
        %v504 = vadd.f32 %v295, %v439
        %v505 = vadd.f32 %v296, %v442
        %v506 = vadd.f32 %v297, %v445
        %v507 = vadd.f32 %v298, %v448
        %v508 = vadd.f32 %v299, %v451
        %v509 = vadd.f32 %v300, %v454
        %v510 = vadd.f32 %v301, %v457
        %v511 = vadd.f32 %v302, %v460
        %v512 = vadd.f32 %v303, %v463
        %v513 = vadd.f32 %v304, %v466
        %v514 = vadd.f32 %v305, %v469
        %v515 = vadd.f32 %v306, %v472
        %v516 = vadd.f32 %v307, %v475
        %v517 = vadd.f32 %v308, %v478
        %v518 = vadd.f32 %v309, %v481
        %v519 = vadd.f32 %v310, %v484
        %v520 = vadd.f32 %v311, %v487
        %521 = vst [vmem:[#allocation2] sm:$0xff] %v489
        %522 = vst [vmem:[#allocation2 + $0x8] sm:$0xff] %v490
        %523 = vst [vmem:[#allocation2 + $0x10] sm:$0xff] %v491
        %524 = vst [vmem:[#allocation2 + $0x18] sm:$0xff] %v492
        %525 = vst [vmem:[#allocation2 + $0x20] sm:$0xff] %v493
        %526 = vst [vmem:[#allocation2 + $0x28] sm:$0xff] %v494
        %527 = vst [vmem:[#allocation2 + $0x30] sm:$0xff] %v495
        %528 = vst [vmem:[#allocation2 + $0x38] sm:$0xff] %v496
        %529 = vst [vmem:[#allocation2 + $0x40] sm:$0xff] %v497
        %530 = vst [vmem:[#allocation2 + $0x48] sm:$0xff] %v498
        %531 = vst [vmem:[#allocation2 + $0x50] sm:$0xff] %v499
        %532 = vst [vmem:[#allocation2 + $0x58] sm:$0xff] %v500
        %533 = vst [vmem:[#allocation2 + $0x60] sm:$0xff] %v501
        %534 = vst [vmem:[#allocation2 + $0x68] sm:$0xff] %v502
        %535 = vst [vmem:[#allocation2 + $0x70] sm:$0xff] %v503
        %536 = vst [vmem:[#allocation2 + $0x78] sm:$0xff] %v504
        %537 = vst [vmem:[#allocation2 + $0x80] sm:$0xff] %v505
        %538 = vst [vmem:[#allocation2 + $0x88] sm:$0xff] %v506
        %539 = vst [vmem:[#allocation2 + $0x90] sm:$0xff] %v507
        %540 = vst [vmem:[#allocation2 + $0x98] sm:$0xff] %v508
        %541 = vst [vmem:[#allocation2 + $0xa0] sm:$0xff] %v509
        %542 = vst [vmem:[#allocation2 + $0xa8] sm:$0xff] %v510
        %543 = vst [vmem:[#allocation2 + $0xb0] sm:$0xff] %v511
        %544 = vst [vmem:[#allocation2 + $0xb8] sm:$0xff] %v512
        %545 = vst [vmem:[#allocation2 + $0xc0] sm:$0xff] %v513
        %546 = vst [vmem:[#allocation2 + $0xc8] sm:$0xff] %v514
        %547 = vst [vmem:[#allocation2 + $0xd0] sm:$0xff] %v515
        %548 = vst [vmem:[#allocation2 + $0xd8] sm:$0xff] %v516
        %549 = vst [vmem:[#allocation2 + $0xe0] sm:$0xff] %v517
        %550 = vst [vmem:[#allocation2 + $0xe8] sm:$0xff] %v518
        %551 = vst [vmem:[#allocation2 + $0xf0] sm:$0xff] %v519
        %552 = vst [vmem:[#allocation2 + $0xf8] sm:$0xff] %v520
        %v553 = vld [vmem:[#allocation3] sm:$0x3]
        %v554 = vadd.f32 %v228, %v230
        %v555 = vadd.f32 %v554, %v232
        %v556 = vadd.f32 %v555, %v234
        %v557 = vadd.f32 %v556, %v236
        %v558 = vadd.f32 %v557, %v238
        %v559 = vadd.f32 %v558, %v240
        %v560 = vadd.f32 %v559, %v242
        %v561 = vadd.f32 %v560, %v244
        %v562 = vadd.f32 %v561, %v246
        %v563 = vadd.f32 %v562, %v248
        %v564 = vadd.f32 %v563, %v250
        %v565 = vadd.f32 %v564, %v252
        %v566 = vadd.f32 %v565, %v254
        %v567 = vadd.f32 %v566, %v256
        %v568 = vadd.f32 %v567, %v258
        %v569 = vrot.slane %v568, 4
        %v570 = vadd.f32 %v568, %v569
        %v571 = vrot.slane %v570, 2
        %v572 = vadd.f32 %v570, %v571
        %v573 = vrot.slane %v572, 1
        %v574 = vadd.f32 %v572, %v573
        %v575 = vadd.f32 %v229, %v231
        %v576 = vadd.f32 %v575, %v233
        %v577 = vadd.f32 %v576, %v235
        %v578 = vadd.f32 %v577, %v237
        %v579 = vadd.f32 %v578, %v239
        %v580 = vadd.f32 %v579, %v241
        %v581 = vadd.f32 %v580, %v243
        %v582 = vadd.f32 %v581, %v245
        %v583 = vadd.f32 %v582, %v247
        %v584 = vadd.f32 %v583, %v249
        %v585 = vadd.f32 %v584, %v251
        %v586 = vadd.f32 %v585, %v253
        %v587 = vadd.f32 %v586, %v255
        %v588 = vadd.f32 %v587, %v257
        %v589 = vadd.f32 %v588, %v259
        %v590 = vrot.slane %v589, 4
        %v591 = vadd.f32 %v589, %v590
        %v592 = vrot.slane %v591, 2
        %v593 = vadd.f32 %v591, %v592
        %v594 = vrot.slane %v593, 1
        %v595 = vadd.f32 %v593, %v594
        %v598 = vrot.slane %v595, 7
        %vm599 = vcmask 1040384
        %v600 = vsel %vm599, %v574, %v598
        %v602 = vadd.f32 %v553, %v600
        %v603 = vlaneseq
        %vm604 = vcmp.ge.s32.totalorder %v603, 0
        %vm605 = vcmp.lt.s32.totalorder %v603, 256
        %vm606 = vmand %vm604, %vm605
        %607 = vst.msk [vmem:[#allocation3] sm:$0x3] %vm606, %v602
        %p608 = scmp.eq.s32.totalorder %s25, 3
        // Predicated region
        $region33: #{tpu_custom_call.1} parent=23 // pred_check
          %p609 = pneg %p608
        $region34: #{tpu_custom_call.1} parent=23 // pred_check_branch
          %611 = sbr.rel (%p609) target = $region36
        $region35: #{tpu_custom_call.1} parent=23 // pred_region
          %v612 = vld [vmem:[#allocation3] sm:$0x3]
          %v613 = vmul.f32 %v612, 0.002
          %s614 = scalar_lea.vmem [#allocation3], %s260
          %v615 = vld [vmem:[%s614] sm:$0x1]
          %v616 = vmul.f32 %v615, 0.002
          %v617 = vld [vmem:[#allocation2] sm:$0xff]
          %v618 = vld [vmem:[#allocation2 + $0x8] sm:$0xff]
          %v619 = vld [vmem:[#allocation2 + $0x10] sm:$0xff]
          %v620 = vld [vmem:[#allocation2 + $0x18] sm:$0xff]
          %v621 = vld [vmem:[#allocation2 + $0x20] sm:$0xff]
          %v622 = vld [vmem:[#allocation2 + $0x28] sm:$0xff]
          %v623 = vld [vmem:[#allocation2 + $0x30] sm:$0xff]
          %v624 = vld [vmem:[#allocation2 + $0x38] sm:$0xff]
          %v625 = vld [vmem:[#allocation2 + $0x40] sm:$0xff]
          %v626 = vld [vmem:[#allocation2 + $0x48] sm:$0xff]
          %v627 = vld [vmem:[#allocation2 + $0x50] sm:$0xff]
          %v628 = vld [vmem:[#allocation2 + $0x58] sm:$0xff]
          %v629 = vld [vmem:[#allocation2 + $0x60] sm:$0xff]
          %v630 = vld [vmem:[#allocation2 + $0x68] sm:$0xff]
          %v631 = vld [vmem:[#allocation2 + $0x70] sm:$0xff]
          %v632 = vld [vmem:[#allocation2 + $0x78] sm:$0xff]
          %v633 = vld [vmem:[#allocation2 + $0x80] sm:$0xff]
          %v634 = vld [vmem:[#allocation2 + $0x88] sm:$0xff]
          %v635 = vld [vmem:[#allocation2 + $0x90] sm:$0xff]
          %v636 = vld [vmem:[#allocation2 + $0x98] sm:$0xff]
          %v637 = vld [vmem:[#allocation2 + $0xa0] sm:$0xff]
          %v638 = vld [vmem:[#allocation2 + $0xa8] sm:$0xff]
          %v639 = vld [vmem:[#allocation2 + $0xb0] sm:$0xff]
          %v640 = vld [vmem:[#allocation2 + $0xb8] sm:$0xff]
          %v641 = vld [vmem:[#allocation2 + $0xc0] sm:$0xff]
          %v642 = vld [vmem:[#allocation2 + $0xc8] sm:$0xff]
          %v643 = vld [vmem:[#allocation2 + $0xd0] sm:$0xff]
          %v644 = vld [vmem:[#allocation2 + $0xd8] sm:$0xff]
          %v645 = vld [vmem:[#allocation2 + $0xe0] sm:$0xff]
          %v646 = vld [vmem:[#allocation2 + $0xe8] sm:$0xff]
          %v647 = vld [vmem:[#allocation2 + $0xf0] sm:$0xff]
          %v648 = vld [vmem:[#allocation2 + $0xf8] sm:$0xff]
          %v649 = vmul.f32 %v617, 0.002
          %v650 = vmul.f32 %v618, 0.002
          %v651 = vmul.f32 %v619, 0.002
          %v652 = vmul.f32 %v620, 0.002
          %v653 = vmul.f32 %v621, 0.002
          %v654 = vmul.f32 %v622, 0.002
          %v655 = vmul.f32 %v623, 0.002
          %v656 = vmul.f32 %v624, 0.002
          %v657 = vmul.f32 %v625, 0.002
          %v658 = vmul.f32 %v626, 0.002
          %v659 = vmul.f32 %v627, 0.002
          %v660 = vmul.f32 %v628, 0.002
          %v661 = vmul.f32 %v629, 0.002
          %v662 = vmul.f32 %v630, 0.002
          %v663 = vmul.f32 %v631, 0.002
          %v664 = vmul.f32 %v632, 0.002
          %v665 = vmul.f32 %v633, 0.002
          %v666 = vmul.f32 %v634, 0.002
          %v667 = vmul.f32 %v635, 0.002
          %v668 = vmul.f32 %v636, 0.002
          %v669 = vmul.f32 %v637, 0.002
          %v670 = vmul.f32 %v638, 0.002
          %v671 = vmul.f32 %v639, 0.002
          %v672 = vmul.f32 %v640, 0.002
          %v673 = vmul.f32 %v641, 0.002
          %v674 = vmul.f32 %v642, 0.002
          %v675 = vmul.f32 %v643, 0.002
          %v676 = vmul.f32 %v644, 0.002
          %v677 = vmul.f32 %v645, 0.002
          %v678 = vmul.f32 %v646, 0.002
          %v679 = vmul.f32 %v647, 0.002
          %v680 = vmul.f32 %v648, 0.002
          %v682 = vperm.slane %v613, 0
          %v683 = vperm.slane %v613, 1
          %686 = vxpose.xlu0.b32.start [1/16] %v682, 128
          %687 = vxpose.xlu0.b32.cont [2/16] 0.0, 128
          %688 = vxpose.xlu0.b32.cont [3/16] 0.0, 128
          %689 = vxpose.xlu0.b32.cont [4/16] 0.0, 128
          %690 = vxpose.xlu0.b32.cont [5/16] 0.0, 128
          %691 = vxpose.xlu0.b32.cont [6/16] 0.0, 128
          %692 = vxpose.xlu0.b32.cont [7/16] 0.0, 128
          %693 = vxpose.xlu0.b32.cont [8/16] 0.0, 128
          %694 = vxpose.xlu0.b32.cont [9/16] 0.0, 128
          %695 = vxpose.xlu0.b32.cont [10/16] 0.0, 128
          %696 = vxpose.xlu0.b32.cont [11/16] 0.0, 128
          %697 = vxpose.xlu0.b32.cont [12/16] 0.0, 128
          %698 = vxpose.xlu0.b32.cont [13/16] 0.0, 128
          %699 = vxpose.xlu0.b32.cont [14/16] 0.0, 128
          %700 = vxpose.xlu0.b32.cont [15/16] 0.0, 128
          %701 = vxpose.xlu0.b32.end [16/16] 0.0, 128
          %v702 = vpop.trf.xlu0
          %v703 = vpop.trf.xlu0
          %v704 = vpop.trf.xlu0
          %v705 = vpop.trf.xlu0
          %v706 = vpop.trf.xlu0
          %v707 = vpop.trf.xlu0
          %v708 = vpop.trf.xlu0
          %v709 = vpop.trf.xlu0
          %v710 = vpop.trf.xlu0
          %v711 = vpop.trf.xlu0
          %v712 = vpop.trf.xlu0
          %v713 = vpop.trf.xlu0
          %v714 = vpop.trf.xlu0
          %v715 = vpop.trf.xlu0
          %v716 = vpop.trf.xlu0
          %v717 = vpop.trf.xlu0
          %718 = vxpose.xlu0.b32.start [1/16] %v683, 128
          %719 = vxpose.xlu0.b32.cont [2/16] 0.0, 128
          %720 = vxpose.xlu0.b32.cont [3/16] 0.0, 128
          %721 = vxpose.xlu0.b32.cont [4/16] 0.0, 128
          %722 = vxpose.xlu0.b32.cont [5/16] 0.0, 128
          %723 = vxpose.xlu0.b32.cont [6/16] 0.0, 128
          %724 = vxpose.xlu0.b32.cont [7/16] 0.0, 128
          %725 = vxpose.xlu0.b32.cont [8/16] 0.0, 128
          %726 = vxpose.xlu0.b32.cont [9/16] 0.0, 128
          %727 = vxpose.xlu0.b32.cont [10/16] 0.0, 128
          %728 = vxpose.xlu0.b32.cont [11/16] 0.0, 128
          %729 = vxpose.xlu0.b32.cont [12/16] 0.0, 128
          %730 = vxpose.xlu0.b32.cont [13/16] 0.0, 128
          %731 = vxpose.xlu0.b32.cont [14/16] 0.0, 128
          %732 = vxpose.xlu0.b32.cont [15/16] 0.0, 128
          %733 = vxpose.xlu0.b32.end [16/16] 0.0, 128
          %v734 = vpop.trf.xlu0
          %v735 = vpop.trf.xlu0
          %v736 = vpop.trf.xlu0
          %v737 = vpop.trf.xlu0
          %v738 = vpop.trf.xlu0
          %v739 = vpop.trf.xlu0
          %v740 = vpop.trf.xlu0
          %v741 = vpop.trf.xlu0
          %v742 = vpop.trf.xlu0
          %v743 = vpop.trf.xlu0
          %v744 = vpop.trf.xlu0
          %v745 = vpop.trf.xlu0
          %v746 = vpop.trf.xlu0
          %v747 = vpop.trf.xlu0
          %v748 = vpop.trf.xlu0
          %v749 = vpop.trf.xlu0
          %vm750 = vcmask 7168
          %v752 = vsel %vm750, %v702, 0
          %v755 = vsel %vm750, %v703, 0
          %v758 = vsel %vm750, %v704, 0
          %v761 = vsel %vm750, %v705, 0
          %v764 = vsel %vm750, %v706, 0
          %v767 = vsel %vm750, %v707, 0
          %v770 = vsel %vm750, %v708, 0
          %v773 = vsel %vm750, %v709, 0
          %v776 = vsel %vm750, %v710, 0
          %v779 = vsel %vm750, %v711, 0
          %v782 = vsel %vm750, %v712, 0
          %v785 = vsel %vm750, %v713, 0
          %v788 = vsel %vm750, %v714, 0
          %v791 = vsel %vm750, %v715, 0
          %v794 = vsel %vm750, %v716, 0
          %v797 = vsel %vm750, %v717, 0
          %v800 = vsel %vm750, %v734, 0
          %v803 = vsel %vm750, %v735, 0
          %v806 = vsel %vm750, %v736, 0
          %v809 = vsel %vm750, %v737, 0
          %v812 = vsel %vm750, %v738, 0
          %v815 = vsel %vm750, %v739, 0
          %v818 = vsel %vm750, %v740, 0
          %v821 = vsel %vm750, %v741, 0
          %v824 = vsel %vm750, %v742, 0
          %v827 = vsel %vm750, %v743, 0
          %v830 = vsel %vm750, %v744, 0
          %v833 = vsel %vm750, %v745, 0
          %v836 = vsel %vm750, %v746, 0
          %v839 = vsel %vm750, %v747, 0
          %v842 = vsel %vm750, %v748, 0
          %v845 = vsel %vm750, %v749, 0
          %v848 = vsel %vm599, %v616, 0
          %850 = vmatpush.msra.mxu0 0.0
          %851 = vmatpush.msra.mxu0 0.0
          %852 = vmatpush.msra.mxu0 0.0
          %853 = vmatpush.msra.mxu0 0.0
          %854 = vmatpush.msra.mxu0 0.0
          %855 = vmatpush.msra.mxu0 0.0
          %856 = vmatpush.msra.mxu0 0.0
          %857 = vmatpush.msra.mxu0 0.0
          %858 = vmatpush.msra.mxu0 0.0
          %859 = vmatpush.msra.mxu0 0.0
          %860 = vmatpush.msra.mxu0 0.0
          %861 = vmatpush.msra.mxu0 0.0
          %862 = vmatpush.msra.mxu0 0.0
          %863 = vmatpush.msra.mxu0 0.0
          %864 = vmatpush.msra.mxu0 0.0
          %865 = vmatpush.msra.mxu0 %v848
          %866 = vmatmul.f32.gmra.mxu0 %v752
          %v867 = vpop.f32.mrf.mxu0
          %v868 = vadd.f32 0.0, %v867
          %869 = vmatmul.f32.gmra.mxu0 %v755
          %v870 = vpop.f32.mrf.mxu0
          %v871 = vadd.f32 0.0, %v870
          %872 = vmatmul.f32.gmra.mxu0 %v758
          %v873 = vpop.f32.mrf.mxu0
          %v874 = vadd.f32 0.0, %v873
          %875 = vmatmul.f32.gmra.mxu0 %v761
          %v876 = vpop.f32.mrf.mxu0
          %v877 = vadd.f32 0.0, %v876
          %878 = vmatmul.f32.gmra.mxu0 %v764
          %v879 = vpop.f32.mrf.mxu0
          %v880 = vadd.f32 0.0, %v879
          %881 = vmatmul.f32.gmra.mxu0 %v767
          %v882 = vpop.f32.mrf.mxu0
          %v883 = vadd.f32 0.0, %v882
          %884 = vmatmul.f32.gmra.mxu0 %v770
          %v885 = vpop.f32.mrf.mxu0
          %v886 = vadd.f32 0.0, %v885
          %887 = vmatmul.f32.gmra.mxu0 %v773
          %v888 = vpop.f32.mrf.mxu0
          %v889 = vadd.f32 0.0, %v888
          %890 = vmatmul.f32.gmra.mxu0 %v776
          %v891 = vpop.f32.mrf.mxu0
          %v892 = vadd.f32 0.0, %v891
          %893 = vmatmul.f32.gmra.mxu0 %v779
          %v894 = vpop.f32.mrf.mxu0
          %v895 = vadd.f32 0.0, %v894
          %896 = vmatmul.f32.gmra.mxu0 %v782
          %v897 = vpop.f32.mrf.mxu0
          %v898 = vadd.f32 0.0, %v897
          %899 = vmatmul.f32.gmra.mxu0 %v785
          %v900 = vpop.f32.mrf.mxu0
          %v901 = vadd.f32 0.0, %v900
          %902 = vmatmul.f32.gmra.mxu0 %v788
          %v903 = vpop.f32.mrf.mxu0
          %v904 = vadd.f32 0.0, %v903
          %905 = vmatmul.f32.gmra.mxu0 %v791
          %v906 = vpop.f32.mrf.mxu0
          %v907 = vadd.f32 0.0, %v906
          %908 = vmatmul.f32.gmra.mxu0 %v794
          %v909 = vpop.f32.mrf.mxu0
          %v910 = vadd.f32 0.0, %v909
          %911 = vmatmul.f32.gmra.mxu0 %v797
          %v912 = vpop.f32.mrf.mxu0
          %v913 = vadd.f32 0.0, %v912
          %914 = vmatmul.f32.gmra.mxu0 %v800
          %v915 = vpop.f32.mrf.mxu0
          %v916 = vadd.f32 0.0, %v915
          %917 = vmatmul.f32.gmra.mxu0 %v803
          %v918 = vpop.f32.mrf.mxu0
          %v919 = vadd.f32 0.0, %v918
          %920 = vmatmul.f32.gmra.mxu0 %v806
          %v921 = vpop.f32.mrf.mxu0
          %v922 = vadd.f32 0.0, %v921
          %923 = vmatmul.f32.gmra.mxu0 %v809
          %v924 = vpop.f32.mrf.mxu0
          %v925 = vadd.f32 0.0, %v924
          %926 = vmatmul.f32.gmra.mxu0 %v812
          %v927 = vpop.f32.mrf.mxu0
          %v928 = vadd.f32 0.0, %v927
          %929 = vmatmul.f32.gmra.mxu0 %v815
          %v930 = vpop.f32.mrf.mxu0
          %v931 = vadd.f32 0.0, %v930
          %932 = vmatmul.f32.gmra.mxu0 %v818
          %v933 = vpop.f32.mrf.mxu0
          %v934 = vadd.f32 0.0, %v933
          %935 = vmatmul.f32.gmra.mxu0 %v821
          %v936 = vpop.f32.mrf.mxu0
          %v937 = vadd.f32 0.0, %v936
          %938 = vmatmul.f32.gmra.mxu0 %v824
          %v939 = vpop.f32.mrf.mxu0
          %v940 = vadd.f32 0.0, %v939
          %941 = vmatmul.f32.gmra.mxu0 %v827
          %v942 = vpop.f32.mrf.mxu0
          %v943 = vadd.f32 0.0, %v942
          %944 = vmatmul.f32.gmra.mxu0 %v830
          %v945 = vpop.f32.mrf.mxu0
          %v946 = vadd.f32 0.0, %v945
          %947 = vmatmul.f32.gmra.mxu0 %v833
          %v948 = vpop.f32.mrf.mxu0
          %v949 = vadd.f32 0.0, %v948
          %950 = vmatmul.f32.gmra.mxu0 %v836
          %v951 = vpop.f32.mrf.mxu0
          %v952 = vadd.f32 0.0, %v951
          %953 = vmatmul.f32.gmra.mxu0 %v839
          %v954 = vpop.f32.mrf.mxu0
          %v955 = vadd.f32 0.0, %v954
          %956 = vmatmul.f32.gmra.mxu0 %v842
          %v957 = vpop.f32.mrf.mxu0
          %v958 = vadd.f32 0.0, %v957
          %959 = vmatmul.f32.gmra.mxu0 %v845
          %v960 = vpop.f32.mrf.mxu0
          %v961 = vadd.f32 0.0, %v960
          %962 = vdwg.mxu0
          %v963 = vsub.f32 %v649, %v868
          %v964 = vsub.f32 %v650, %v871
          %v965 = vsub.f32 %v651, %v874
          %v966 = vsub.f32 %v652, %v877
          %v967 = vsub.f32 %v653, %v880
          %v968 = vsub.f32 %v654, %v883
          %v969 = vsub.f32 %v655, %v886
          %v970 = vsub.f32 %v656, %v889
          %v971 = vsub.f32 %v657, %v892
          %v972 = vsub.f32 %v658, %v895
          %v973 = vsub.f32 %v659, %v898
          %v974 = vsub.f32 %v660, %v901
          %v975 = vsub.f32 %v661, %v904
          %v976 = vsub.f32 %v662, %v907
          %v977 = vsub.f32 %v663, %v910
          %v978 = vsub.f32 %v664, %v913
          %v979 = vsub.f32 %v665, %v916
          %v980 = vsub.f32 %v666, %v919
          %v981 = vsub.f32 %v667, %v922
          %v982 = vsub.f32 %v668, %v925
          %v983 = vsub.f32 %v669, %v928
          %v984 = vsub.f32 %v670, %v931
          %v985 = vsub.f32 %v671, %v934
          %v986 = vsub.f32 %v672, %v937
          %v987 = vsub.f32 %v673, %v940
          %v988 = vsub.f32 %v674, %v943
          %v989 = vsub.f32 %v675, %v946
          %v990 = vsub.f32 %v676, %v949
          %v991 = vsub.f32 %v677, %v952
          %v992 = vsub.f32 %v678, %v955
          %v993 = vsub.f32 %v679, %v958
          %v994 = vsub.f32 %v680, %v961
          %995 = vst [vmem:[%s176] sm:$0x1] %v616
          %v996 = vmul.f32 %v963, %v963
          %v997 = vmul.f32 %v964, %v964
          %v998 = vmul.f32 %v965, %v965
          %v999 = vmul.f32 %v966, %v966
          %v1000 = vmul.f32 %v967, %v967
          %v1001 = vmul.f32 %v968, %v968
          %v1002 = vmul.f32 %v969, %v969
          %v1003 = vmul.f32 %v970, %v970
          %v1004 = vmul.f32 %v971, %v971
          %v1005 = vmul.f32 %v972, %v972
          %v1006 = vmul.f32 %v973, %v973
          %v1007 = vmul.f32 %v974, %v974
          %v1008 = vmul.f32 %v975, %v975
          %v1009 = vmul.f32 %v976, %v976
          %v1010 = vmul.f32 %v977, %v977
          %v1011 = vmul.f32 %v978, %v978
          %v1012 = vmul.f32 %v979, %v979
          %v1013 = vmul.f32 %v980, %v980
          %v1014 = vmul.f32 %v981, %v981
          %v1015 = vmul.f32 %v982, %v982
          %v1016 = vmul.f32 %v983, %v983
          %v1017 = vmul.f32 %v984, %v984
          %v1018 = vmul.f32 %v985, %v985
          %v1019 = vmul.f32 %v986, %v986
          %v1020 = vmul.f32 %v987, %v987
          %v1021 = vmul.f32 %v988, %v988
          %v1022 = vmul.f32 %v989, %v989
          %v1023 = vmul.f32 %v990, %v990
          %v1024 = vmul.f32 %v991, %v991
          %v1025 = vmul.f32 %v992, %v992
          %v1026 = vmul.f32 %v993, %v993
          %v1027 = vmul.f32 %v994, %v994
          %v1028 = vadd.f32 %v996, %v997
          %v1029 = vadd.f32 %v1028, %v998
          %v1030 = vadd.f32 %v1029, %v999
          %v1031 = vadd.f32 %v1030, %v1000
          %v1032 = vadd.f32 %v1031, %v1001
          %v1033 = vadd.f32 %v1032, %v1002
          %v1034 = vadd.f32 %v1033, %v1003
          %v1035 = vadd.f32 %v1034, %v1004
          %v1036 = vadd.f32 %v1035, %v1005
          %v1037 = vadd.f32 %v1036, %v1006
          %v1038 = vadd.f32 %v1037, %v1007
          %v1039 = vadd.f32 %v1038, %v1008
          %v1040 = vadd.f32 %v1039, %v1009
          %v1041 = vadd.f32 %v1040, %v1010
          %v1042 = vadd.f32 %v1041, %v1011
          %v1043 = vadd.f32 %v1042, %v1012
          %v1044 = vadd.f32 %v1043, %v1013
          %v1045 = vadd.f32 %v1044, %v1014
          %v1046 = vadd.f32 %v1045, %v1015
          %v1047 = vadd.f32 %v1046, %v1016
          %v1048 = vadd.f32 %v1047, %v1017
          %v1049 = vadd.f32 %v1048, %v1018
          %v1050 = vadd.f32 %v1049, %v1019
          %v1051 = vadd.f32 %v1050, %v1020
          %v1052 = vadd.f32 %v1051, %v1021
          %v1053 = vadd.f32 %v1052, %v1022
          %v1054 = vadd.f32 %v1053, %v1023
          %v1055 = vadd.f32 %v1054, %v1024
          %v1056 = vadd.f32 %v1055, %v1025
          %v1057 = vadd.f32 %v1056, %v1026
          %v1058 = vadd.f32 %v1057, %v1027
          %1059 = vadd.xlane.f32.xlu0 %v1058
          %v1060 = vpop.xlane.xlu0 %1059
          %v1061 = vrot.slane %v1060, 4
          %v1062 = vadd.f32 %v1060, %v1061
          %v1063 = vrot.slane %v1062, 2
          %v1064 = vadd.f32 %v1062, %v1063
          %v1065 = vrot.slane %v1064, 1
          %v1066 = vadd.f32 %v1064, %v1065
          %s1067 = vtos %v1066
          %v1068 = vstv %s1067
          %vm1069 = vcmask 0
          %1070 = vst.msk [vmem:[%s185] sm:$0x1] %vm1069, %v1068
        $region36: #{tpu_custom_call.1} parent=23 // pred_fallthru
          _
        %s1071 = sand.u32 %s66, 1
        %s1072 = scalar_lea.sflag [#allocation6], %s1071
        %s1073 = sand.u32 %s66, 1
        %s1074 = scalar_lea.vmem [#allocation7], %s1073
        %p1075 = scmp.lt.s32.totalorder %s24, 1
        %s1076 = scalar_select %p1075, %s24, 1
        %s1077 = scalar_lea.vmem %s2, %s1076
        // Predicated region
        $region37: #{tpu_custom_call.1} parent=23 // pred_check
          %p1078 = pneg %p76
        $region38: #{tpu_custom_call.1} parent=23 // pred_check_branch
          %1080 = sbr.rel (%p1078) target = $region40
        $region39: #{tpu_custom_call.1} parent=23 // pred_region
          %1082 = vsyncadd %s1072, 0
          %s1083 = scalar_lea.hbm %s1, %s24
          %s1085 = sshll.u32 %s1074, 4
          %s1086 = int_to_ptr.vmem [resolvable:$true] %s1085
          %s1087 = sshll.u32 %s1083, 4
          %s1088 = int_to_ptr.hbm [resolvable:$true] %s1087
          %1090 = dma.vmem_to_hbm [thread:$0]  %s1086, 16, %s1088, %s1072
        $region40: #{tpu_custom_call.1} parent=23 // pred_fallthru
          _
        // Predicated region
        $region41: #{tpu_custom_call.1} parent=23 // pred_check
          %p1091 = pneg %p102
        $region42: #{tpu_custom_call.1} parent=23 // pred_check_branch
          %1093 = sbr.rel (%p1091) target = $region44
        $region43: #{tpu_custom_call.1} parent=23 // pred_region
          _
        $region44: #{tpu_custom_call.1} parent=23 // pred_fallthru
          _
      $region24: #{tpu_custom_call.1} parent=5 // pred_fallthru
        _
      %p1094 = scmp.le.s32.totalorder 2, %s15
      // Predicated region
      $region45: #{tpu_custom_call.1} parent=5 // pred_check
        %p1095 = pneg %p1094
      $region46: #{tpu_custom_call.1} parent=5 // pred_check_branch
        %1097 = sbr.rel (%p1095) target = $region48
      $region47: #{tpu_custom_call.1} parent=5 // pred_region
        %s1098 = ssub.s32 %s15, 2
        // Predicated region
        $region49: #{tpu_custom_call.1} parent=47 // pred_check
          %p1099 = pneg %p82
        $region50: #{tpu_custom_call.1} parent=47 // pred_check_branch
          %1101 = sbr.rel (%p1099) target = $region52
        $region51: #{tpu_custom_call.1} parent=47 // pred_region
          %s1102 = sand.u32 %s67, 1
          %s1103 = scalar_lea.sflag [#allocation6], %s1102
          %s1104 = sand.u32 %s67, 1
          %s1105 = scalar_lea.vmem [#allocation7], %s1104
          %1107 = dma.done %s1103, 16
        $region52: #{tpu_custom_call.1} parent=47 // pred_fallthru
          _
        // Predicated region
        $region53: #{tpu_custom_call.1} parent=47 // pred_check
          %p1108 = pneg %p108
        $region54: #{tpu_custom_call.1} parent=47 // pred_check_branch
          %1110 = sbr.rel (%p1108) target = $region56
        $region55: #{tpu_custom_call.1} parent=47 // pred_region
          %p1111 = scmp.lt.s32.totalorder %s26, 1
          %s1112 = scalar_select %p1111, %s26, 1
          %s1113 = scalar_lea.vmem %s2, %s1112
        $region56: #{tpu_custom_call.1} parent=47 // pred_fallthru
          _
      $region48: #{tpu_custom_call.1} parent=5 // pred_fallthru
        _
    $region6: #{tpu_custom_call.1} parent=1 // loop_footer
      %s19 = sadd.s32 1, %s15
    $region7: #{tpu_custom_call.1} parent=1 // loop_footer_branch
      %14 = sbr.rel target = $region3
    $region8: #{tpu_custom_call.1} parent=1 // loop_exit
      _
    %1114 = vsyncpa [#allocation5], 1
    %s1115 = scalar_lea.sflag [#allocation5], 1
    %1116 = vsyncpa %s1115, 1
    %1117 = vsyncpa [#allocation6], 1
    %s1118 = scalar_lea.sflag [#allocation6], 1
    %1119 = vsyncpa %s1118, 1

</llo_original>
